<compile_context>
chip_gen: v7x
topology: tpu7x:2x2x1
jax: 0.10.0
libtpu: 0.0.40
codegen_flags: <defaults>
</compile_context>

<pallas_src>
import functools

import jax
import jax.numpy as jnp
from jax.experimental import pallas as pl
from jax.experimental.pallas import tpu as pltpu


def _round_up(x, m):
    return (x + m - 1) // m * m


def _critic_kernel(x_ref, w1_ref, b1_ref, w2h_ref, w2a_ref, b2_ref,
                   w3_ref, b3_ref, out_ref, *, ds_pad):
    # x_ref: (ds_pad + da_pad, B_tile)  packed [state ; action], features on sublanes
    xs = x_ref[:ds_pad, :]          # (ds_pad, B_tile)
    xa = x_ref[ds_pad:, :]          # (da_pad, B_tile)

    # Layer 1: relu(W1 @ s + b1)                          -> (H, B_tile)
    h1 = jnp.dot(w1_ref[...], xs, preferred_element_type=jnp.float32) + b1_ref[...]
    h1 = jnp.maximum(h1, 0.0)

    # Layer 2: relu(W2_h @ h1 + W2_a @ a + b2)            -> (H, B_tile)
    h2 = (jnp.dot(w2h_ref[...], h1, preferred_element_type=jnp.float32)
          + jnp.dot(w2a_ref[...], xa, preferred_element_type=jnp.float32)
          + b2_ref[...])
    h2 = jnp.maximum(h2, 0.0)

    # Layer 3: N=1 "matmul" done as VPU multiply + sublane reduce -> (1, B_tile)
    q = jnp.sum(h2 * w3_ref[...], axis=0, keepdims=True) + b3_ref[0, 0]
    out_ref[...] = q                # lane-dense store


def critic_forward(state, action, params, *, block_b=512):
    """Critic forward pass as a single batch-tiled Pallas kernel.

    state:  (B, state_dim)  float32
    action: (B, action_dim) float32
    params: PyTorch-layout weights: w1 (H,Ds), b1 (H,), w2 (H,H+Da), b2 (H,),
            w3 (1,H), b3 (1,)
    """
    B, ds = state.shape
    _, da = action.shape
    H = params["w1"].shape[0]

    # Feature padding to sublane multiples (exact: zero rows/cols contribute 0).
    ds_pad = _round_up(ds, 8)
    da_pad = _round_up(da, 8)
    d_pack = ds_pad + da_pad

    # Batch tile: multiple of 128 lanes, up to block_b rows per grid step.
    bt = _round_up(min(block_b, _round_up(B, 128)), 128)
    b_pad = _round_up(B, bt)
    grid = (b_pad // bt,)

    f32 = jnp.float32
    # Pack [state | action] along features, zero-pad, transpose -> (d_pack, b_pad)
    s_p = jnp.pad(state.astype(f32), ((0, b_pad - B), (0, ds_pad - ds)))
    a_p = jnp.pad(action.astype(f32), ((0, b_pad - B), (0, da_pad - da)))
    x = jnp.concatenate([s_p, a_p], axis=1).T

    # Weights in (out_feat, in_feat) kernel layout, zero-padded on in_feat.
    w1k = jnp.pad(params["w1"].astype(f32), ((0, 0), (0, ds_pad - ds)))   # (H, ds_pad)
    b1k = params["b1"].astype(f32).reshape(H, 1)                          # (H, 1)
    w2h = params["w2"][:, :H].astype(f32)                                 # (H, H)
    w2a = jnp.pad(params["w2"][:, H:].astype(f32), ((0, 0), (0, da_pad - da)))
    b2k = params["b2"].astype(f32).reshape(H, 1)                          # (H, 1)
    w3k = params["w3"].astype(f32).reshape(1, H).T                        # (H, 1)
    b3k = params["b3"].astype(f32).reshape(1, 1)                          # (1, 1) -> SMEM

    def resident(shape):
        return pl.BlockSpec(shape, lambda i: (0, 0))

    flops = 2 * b_pad * H * (ds_pad + H + da_pad + 1)
    bytes_accessed = 4 * (x.size + b_pad + w1k.size + b1k.size + w2h.size
                          + w2a.size + b2k.size + w3k.size + b3k.size)

    out = pl.pallas_call(
        functools.partial(_critic_kernel, ds_pad=ds_pad),
        out_shape=jax.ShapeDtypeStruct((1, b_pad), f32),
        grid=grid,
        in_specs=[
            pl.BlockSpec((d_pack, bt), lambda i: (0, i)),      # streamed inputs
            resident((H, ds_pad)),                             # w1
            resident((H, 1)),                                  # b1
            resident((H, H)),                                  # w2_h
            resident((H, da_pad)),                             # w2_a
            resident((H, 1)),                                  # b2
            resident((H, 1)),                                  # w3
            pl.BlockSpec(memory_space=pltpu.MemorySpace.SMEM), # b3 scalar
        ],
        out_specs=pl.BlockSpec((1, bt), lambda i: (0, i)),     # lane-dense output
        compiler_params=pltpu.CompilerParams(
            dimension_semantics=("parallel",),
            vmem_limit_bytes=32 * 1024 * 1024,
        ),
        cost_estimate=pl.CostEstimate(
            flops=flops, transcendentals=0, bytes_accessed=bytes_accessed),
    )(x, w1k, b1k, w2h, w2a, b2k, w3k, b3k)

    return out[0, :B][:, None]                                  # (B, 1)


def init_params(key, state_dim, action_dim, hidden_dim):
    """Deterministic synthetic parameters in PyTorch nn.Linear layout."""
    ks = jax.random.split(key, 6)
    return dict(
        w1=jax.random.normal(ks[0], (hidden_dim, state_dim), jnp.float32) * 0.1,
        b1=jax.random.normal(ks[1], (hidden_dim,), jnp.float32) * 0.1,
        w2=jax.random.normal(ks[2], (hidden_dim, hidden_dim + action_dim),
                             jnp.float32) * 0.1,
        b2=jax.random.normal(ks[3], (hidden_dim,), jnp.float32) * 0.1,
        w3=jax.random.normal(ks[4], (1, hidden_dim), jnp.float32) * 0.1,
        b3=jax.random.normal(ks[5], (1,), jnp.float32) * 0.1,
    )


def critic_ref(state, action, p):
    """Pure-JAX reference (mirrors the PyTorch forward)."""
    h1 = jax.nn.relu(state @ p["w1"].T + p["b1"])
    h2 = jax.nn.relu(jnp.concatenate([h1, action], axis=1) @ p["w2"].T + p["b2"])
    return h2 @ p["w3"].T + p["b3"]


if __name__ == "__main__":
    B, state_dim, action_dim, hidden_dim = 8, 16, 8, 32

    key = jax.random.PRNGKey(0)
    k_s, k_a, k_p = jax.random.split(key, 3)
    state = jax.random.normal(k_s, (B, state_dim), jnp.float32)
    action = jax.random.normal(k_a, (B, action_dim), jnp.float32)
    params = init_params(k_p, state_dim, action_dim, hidden_dim)

    fwd = jax.jit(critic_forward, static_argnames=("block_b",))

    # Small case (single grid step).
    out = jax.block_until_ready(fwd(state, action, params))
    ref = critic_ref(state, action, params)
    assert out.shape == (B, 1), out.shape
    assert jnp.allclose(out, ref, atol=1e-5, rtol=1e-5), (out, ref)

    # Multi-tile case: exercises the batch grid + padded-row masking.
    B2 = 260
    k_s2, k_a2 = jax.random.split(jax.random.PRNGKey(1), 2)
    state2 = jax.random.normal(k_s2, (B2, state_dim), jnp.float32)
    action2 = jax.random.normal(k_a2, (B2, action_dim), jnp.float32)
    out2 = jax.block_until_ready(fwd(state2, action2, params, block_b=128))
    ref2 = critic_ref(state2, action2, params)
    assert out2.shape == (B2, 1), out2.shape
    assert jnp.allclose(out2, ref2, atol=1e-5, rtol=1e-5)

    print("KERNEL_OK")
</pallas_src>

<mosaic_0001>
module attributes {stable_mosaic.version = 11 : i64} {
  func.func @_critic_kernel(%arg0: i32, %arg1: memref<24x128xf32, #tpu.memory_space<vmem>>, %arg2: memref<32x16xf32, #tpu.memory_space<vmem>>, %arg3: memref<32x1xf32, #tpu.memory_space<vmem>>, %arg4: memref<32x32xf32, #tpu.memory_space<vmem>>, %arg5: memref<32x8xf32, #tpu.memory_space<vmem>>, %arg6: memref<32x1xf32, #tpu.memory_space<vmem>>, %arg7: memref<32x1xf32, #tpu.memory_space<vmem>>, %arg8: memref<1x1xf32, #tpu.memory_space<smem>>, %arg9: memref<1x128xf32, #tpu.memory_space<vmem>>) attributes {dimension_semantics = [#tpu.dimension_semantics<parallel>], iteration_bounds = array<i64: 1>, scalar_prefetch = 0 : i64, scratch_operands = 0 : i64, tpu.core_type = #tpu.core_type<tc>, window_params = [{transform_indices = @transform_0, window_bounds = array<i64: 24, 128>}, {pipeline_mode = #tpu.pipeline_mode<synchronous>, transform_indices = @transform_1, window_bounds = array<i64: 32, 16>}, {pipeline_mode = #tpu.pipeline_mode<synchronous>, transform_indices = @transform_2, window_bounds = array<i64: 32, 1>}, {pipeline_mode = #tpu.pipeline_mode<synchronous>, transform_indices = @transform_3, window_bounds = array<i64: 32, 32>}, {pipeline_mode = #tpu.pipeline_mode<synchronous>, transform_indices = @transform_4, window_bounds = array<i64: 32, 8>}, {pipeline_mode = #tpu.pipeline_mode<synchronous>, transform_indices = @transform_5, window_bounds = array<i64: 32, 1>}, {pipeline_mode = #tpu.pipeline_mode<synchronous>, transform_indices = @transform_6, window_bounds = array<i64: 32, 1>}, {transform_indices = @transform_7, window_bounds = array<i64: 1, 1>}, {transform_indices = @transform_8, window_bounds = array<i64: 1, 128>}]} {
    %c0 = arith.constant 0 : index
    %c0_0 = arith.constant 0 : index
    %0 = vector.load %arg1[%c0, %c0_0] : memref<24x128xf32, #tpu.memory_space<vmem>>, vector<16x128xf32>
    %c16 = arith.constant 16 : index
    %c0_1 = arith.constant 0 : index
    %1 = vector.load %arg1[%c16, %c0_1] : memref<24x128xf32, #tpu.memory_space<vmem>>, vector<8x128xf32>
    %c0_2 = arith.constant 0 : index
    %c0_3 = arith.constant 0 : index
    %2 = vector.load %arg2[%c0_2, %c0_3] : memref<32x16xf32, #tpu.memory_space<vmem>>, vector<32x16xf32>
    %cst = arith.constant dense<0.000000e+00> : vector<32x128xf32>
    %3 = tpu.matmul %2, %0, %cst {dimension_numbers = #tpu.dot_dimension_numbers<[1], [0], [0], [1], [0, 0, 1, 1], [], []>} : vector<32x16xf32>, vector<16x128xf32>, vector<32x128xf32> -> vector<32x128xf32>
    %c0_4 = arith.constant 0 : index
    %c0_5 = arith.constant 0 : index
    %4 = vector.load %arg3[%c0_4, %c0_5] : memref<32x1xf32, #tpu.memory_space<vmem>>, vector<32x1xf32>
    %5 = vector.broadcast %4 : vector<32x1xf32> to vector<32x128xf32>
    %6 = arith.addf %3, %5 : vector<32x128xf32>
    %cst_6 = arith.constant 0.000000e+00 : f32
    %7 = vector.broadcast %cst_6 : f32 to vector<32x128xf32>
    %8 = arith.maximumf %6, %7 : vector<32x128xf32>
    %c0_7 = arith.constant 0 : index
    %c0_8 = arith.constant 0 : index
    %9 = vector.load %arg4[%c0_7, %c0_8] : memref<32x32xf32, #tpu.memory_space<vmem>>, vector<32x32xf32>
    %cst_9 = arith.constant dense<0.000000e+00> : vector<32x128xf32>
    %10 = tpu.matmul %9, %8, %cst_9 {dimension_numbers = #tpu.dot_dimension_numbers<[1], [0], [0], [1], [0, 0, 1, 1], [], []>} : vector<32x32xf32>, vector<32x128xf32>, vector<32x128xf32> -> vector<32x128xf32>
    %c0_10 = arith.constant 0 : index
    %c0_11 = arith.constant 0 : index
    %11 = vector.load %arg5[%c0_10, %c0_11] : memref<32x8xf32, #tpu.memory_space<vmem>>, vector<32x8xf32>
    %cst_12 = arith.constant dense<0.000000e+00> : vector<32x128xf32>
    %12 = tpu.matmul %11, %1, %cst_12 {dimension_numbers = #tpu.dot_dimension_numbers<[1], [0], [0], [1], [0, 0, 1, 1], [], []>} : vector<32x8xf32>, vector<8x128xf32>, vector<32x128xf32> -> vector<32x128xf32>
    %13 = arith.addf %10, %12 : vector<32x128xf32>
    %c0_13 = arith.constant 0 : index
    %c0_14 = arith.constant 0 : index
    %14 = vector.load %arg6[%c0_13, %c0_14] : memref<32x1xf32, #tpu.memory_space<vmem>>, vector<32x1xf32>
    %15 = vector.broadcast %14 : vector<32x1xf32> to vector<32x128xf32>
    %16 = arith.addf %13, %15 : vector<32x128xf32>
    %cst_15 = arith.constant 0.000000e+00 : f32
    %17 = vector.broadcast %cst_15 : f32 to vector<32x128xf32>
    %18 = arith.maximumf %16, %17 : vector<32x128xf32>
    %c0_16 = arith.constant 0 : index
    %c0_17 = arith.constant 0 : index
    %19 = vector.load %arg7[%c0_16, %c0_17] : memref<32x1xf32, #tpu.memory_space<vmem>>, vector<32x1xf32>
    %20 = vector.broadcast %19 : vector<32x1xf32> to vector<32x128xf32>
    %21 = arith.mulf %18, %20 : vector<32x128xf32>
    %cst_18 = arith.constant dense<0.000000e+00> : vector<128xf32>
    %22 = vector.multi_reduction <add>, %21, %cst_18 [0] : vector<32x128xf32> to vector<128xf32>
    %23 = vector.shape_cast %22 : vector<128xf32> to vector<1x128xf32>
    %c0_19 = arith.constant 0 : index
    %c0_20 = arith.constant 0 : index
    %24 = memref.load %arg8[%c0_19, %c0_20] : memref<1x1xf32, #tpu.memory_space<smem>>
    %25 = vector.broadcast %24 : f32 to vector<1x128xf32>
    %26 = arith.addf %23, %25 : vector<1x128xf32>
    %c0_21 = arith.constant 0 : index
    %c0_22 = arith.constant 0 : index
    %27 = vector.load %arg9[%c0_21, %c0_22] : memref<1x128xf32, #tpu.memory_space<vmem>>, vector<1x128xf32>
    tpu.vector_store %arg9[%c0_21, %c0_22], %26 {strides = array<i32>} : memref<1x128xf32, #tpu.memory_space<vmem>>, vector<1x128xf32>,
    return
  }
  func.func @transform_0(%arg0: i32) -> (i32, i32) {
    %c0_i32 = arith.constant 0 : i32
    %c0_i32_0 = arith.constant 0 : i32
    return %c0_i32, %arg0 : i32, i32
  }
  func.func @transform_1(%arg0: i32) -> (i32, i32) {
    %c0_i32 = arith.constant 0 : i32
    %c0_i32_0 = arith.constant 0 : i32
    %c0_i32_1 = arith.constant 0 : i32
    return %c0_i32, %c0_i32_0 : i32, i32
  }
  func.func @transform_2(%arg0: i32) -> (i32, i32) {
    %c0_i32 = arith.constant 0 : i32
    %c0_i32_0 = arith.constant 0 : i32
    %c0_i32_1 = arith.constant 0 : i32
    return %c0_i32, %c0_i32_0 : i32, i32
  }
  func.func @transform_3(%arg0: i32) -> (i32, i32) {
    %c0_i32 = arith.constant 0 : i32
    %c0_i32_0 = arith.constant 0 : i32
    %c0_i32_1 = arith.constant 0 : i32
    return %c0_i32, %c0_i32_0 : i32, i32
  }
  func.func @transform_4(%arg0: i32) -> (i32, i32) {
    %c0_i32 = arith.constant 0 : i32
    %c0_i32_0 = arith.constant 0 : i32
    %c0_i32_1 = arith.constant 0 : i32
    return %c0_i32, %c0_i32_0 : i32, i32
  }
  func.func @transform_5(%arg0: i32) -> (i32, i32) {
    %c0_i32 = arith.constant 0 : i32
    %c0_i32_0 = arith.constant 0 : i32
    %c0_i32_1 = arith.constant 0 : i32
    return %c0_i32, %c0_i32_0 : i32, i32
  }
  func.func @transform_6(%arg0: i32) -> (i32, i32) {
    %c0_i32 = arith.constant 0 : i32
    %c0_i32_0 = arith.constant 0 : i32
    %c0_i32_1 = arith.constant 0 : i32
    return %c0_i32, %c0_i32_0 : i32, i32
  }
  func.func @transform_7(%arg0: i32) -> (i32, i32) {
    %c0_i32 = arith.constant 0 : i32
    %c0_i32_0 = arith.constant 0 : i32
    %c0_i32_1 = arith.constant 0 : i32
    return %c0_i32, %c0_i32_0 : i32, i32
  }
  func.func @transform_8(%arg0: i32) -> (i32, i32) {
    %c0_i32 = arith.constant 0 : i32
    %c0_i32_0 = arith.constant 0 : i32
    return %c0_i32, %arg0 : i32, i32
  }
}

</mosaic_0001>

<llo_original>
// kernel: critic_forward.1
$region0: #{critic_forward.1}
  #allocation0 [shape = 'u32[]', space=smem, size = 0x4, offset = 0x4, fixed_abs, tag = 'smem constant byte address 0x4 - core index']
  #allocation1 [shape = 'u32[144,128]{1,0:T(1,128)}', space=vmem, size = 0x12000, scoped, tag = 'internal scratch']
  #allocation2 [shape = 'f32[1,1]{1,0:T(1,128)S(6)}', space=smem, size = 0x200, scoped, tag = 'scoped memory for critic_forward.1']
  %s0 = inlined_call_operand.vmem [shape: f32[24,128], index: 0, kind: input, shape index: {}]
  %s1 = inlined_call_operand.vmem [shape: f32[32,16], index: 1, kind: input, shape index: {}]
  %s2 = inlined_call_operand.vmem [shape: f32[32,1], index: 2, kind: input, shape index: {}]
  %s3 = inlined_call_operand.vmem [shape: f32[32,32], index: 3, kind: input, shape index: {}]
  %s4 = inlined_call_operand.vmem [shape: f32[32,8], index: 4, kind: input, shape index: {}]
  %s5 = inlined_call_operand.vmem [shape: f32[32,1], index: 5, kind: input, shape index: {}]
  %s6 = inlined_call_operand.vmem [shape: f32[32,1], index: 6, kind: input, shape index: {}]
  %s7 = inlined_call_operand.<no memory space> [shape: f32[1,1], index: 7, kind: input, shape index: {}]
  %s8 = inlined_call_operand.vmem [shape: f32[1,128], index: 8, kind: output, shape index: {}]
  %s9 = sld [smem:[#allocation0]]
  $region42: #{critic_forward.1} parent=0
    _
  %s11 = ssub.s32 1, %s9
  %s12 = scalar_select 0, %s11, %s9
  %13 = sst [smem:[#allocation2]] %s7
  // Predicated region
  $region2: #{critic_forward.1} parent=0 // pred_check
    _
  $region3: #{critic_forward.1} parent=0 // pred_check_branch
    %15 = sbr.rel (0) target = $region5
  $region4: #{critic_forward.1} parent=0 // pred_region
    _
  $region5: #{critic_forward.1} parent=0 // pred_fallthru
    _
  // Predicated region
  $region6: #{critic_forward.1} parent=0 // pred_check
    _
  $region7: #{critic_forward.1} parent=0 // pred_check_branch
    %17 = sbr.rel (0) target = $region9
  $region8: #{critic_forward.1} parent=0 // pred_region
    _
  $region9: #{critic_forward.1} parent=0 // pred_fallthru
    _
  // Predicated region
  $region10: #{critic_forward.1} parent=0 // pred_check
    _
  $region11: #{critic_forward.1} parent=0 // pred_check_branch
    %19 = sbr.rel (0) target = $region13
  $region12: #{critic_forward.1} parent=0 // pred_region
    _
  $region13: #{critic_forward.1} parent=0 // pred_fallthru
    _
  // Predicated region
  $region14: #{critic_forward.1} parent=0 // pred_check
    _
  $region15: #{critic_forward.1} parent=0 // pred_check_branch
    %21 = sbr.rel (0) target = $region17
  $region16: #{critic_forward.1} parent=0 // pred_region
    _
  $region17: #{critic_forward.1} parent=0 // pred_fallthru
    _
  // Predicated region
  $region18: #{critic_forward.1} parent=0 // pred_check
    _
  $region19: #{critic_forward.1} parent=0 // pred_check_branch
    %23 = sbr.rel (0) target = $region21
  $region20: #{critic_forward.1} parent=0 // pred_region
    _
  $region21: #{critic_forward.1} parent=0 // pred_fallthru
    _
  // Predicated region
  $region22: #{critic_forward.1} parent=0 // pred_check
    _
  $region23: #{critic_forward.1} parent=0 // pred_check_branch
    %25 = sbr.rel (0) target = $region25
  $region24: #{critic_forward.1} parent=0 // pred_region
    _
  $region25: #{critic_forward.1} parent=0 // pred_fallthru
    _
  // Predicated region
  $region26: #{critic_forward.1} parent=0 // pred_check
    _
  $region27: #{critic_forward.1} parent=0 // pred_check_branch
    %27 = sbr.rel (0) target = $region29
  $region28: #{critic_forward.1} parent=0 // pred_region
    _
  $region29: #{critic_forward.1} parent=0 // pred_fallthru
    _
  // Predicated region
  $region30: #{critic_forward.1} parent=0 // pred_check
    _
  $region31: #{critic_forward.1} parent=0 // pred_check_branch
    %29 = sbr.rel (0) target = $region33
  $region32: #{critic_forward.1} parent=0 // pred_region
    _
  $region33: #{critic_forward.1} parent=0 // pred_fallthru
    _
  %v30 = vld [vmem:[%s0] sm:$0xff]
  %v31 = vld [vmem:[%s0 + $0x8] sm:$0xff]
  %v32 = vld [vmem:[%s0 + $0x10] sm:$0xff]
  %v33 = vld [vmem:[%s1] sm:$0xff]
  %v34 = vld [vmem:[%s1 + $0x8] sm:$0xff]
  %v35 = vld [vmem:[%s1 + $0x10] sm:$0xff]
  %v36 = vld [vmem:[%s1 + $0x18] sm:$0xff]
  %v37 = vld [vmem:[%s2] sm:$0xff]
  %v38 = vld [vmem:[%s2 + $0x8] sm:$0xff]
  %v39 = vld [vmem:[%s2 + $0x10] sm:$0xff]
  %v40 = vld [vmem:[%s2 + $0x18] sm:$0xff]
  %42 = vset.pattern.permute.xlu0 0
  %43 = vperm.xlu0 %42, %v37
  %v44 = vpop.permute.xlu0 %43
  %47 = vset.pattern.permute.xlu0 0
  %48 = vperm.xlu0 %47, %v38
  %v49 = vpop.permute.xlu0 %48
  %52 = vset.pattern.permute.xlu0 0
  %53 = vperm.xlu0 %52, %v39
  %v54 = vpop.permute.xlu0 %53
  %57 = vset.pattern.permute.xlu0 0
  %58 = vperm.xlu0 %57, %v40
  %v59 = vpop.permute.xlu0 %58
  %vm61 = vcmask 130048
  %v63 = vsel %vm61, %v33, 0
  %v66 = vsel %vm61, %v34, 0
  %v69 = vsel %vm61, %v35, 0
  %v72 = vsel %vm61, %v36, 0
  %74 = vmatprep.subr.mxu0 0.0
  %75 = vmatpush1.msra.mxu0 %v30
  %76 = vmatprep.subr.mxu0 0.0
  %77 = vmatpush1.msra.mxu0 %v31
  %78 = vmatprep.subr.mxu0 0.0
  %79 = vmatpush1.msra.mxu0 0.0
  %80 = vmatprep.subr.mxu0 0.0
  %81 = vmatpush1.msra.mxu0 0.0
  %82 = vmatprep.subr.mxu0 0.0
  %83 = vmatpush1.msra.mxu0 0.0
  %84 = vmatprep.subr.mxu0 0.0
  %85 = vmatpush1.msra.mxu0 0.0
  %86 = vmatprep.subr.mxu0 0.0
  %87 = vmatpush1.msra.mxu0 0.0
  %88 = vmatprep.subr.mxu0 0.0
  %89 = vmatpush1.msra.mxu0 0.0
  %90 = vmatprep.subr.mxu0 0.0
  %91 = vmatpush1.msra.mxu0 0.0
  %92 = vmatprep.subr.mxu0 0.0
  %93 = vmatpush1.msra.mxu0 0.0
  %94 = vmatprep.subr.mxu0 0.0
  %95 = vmatpush1.msra.mxu0 0.0
  %96 = vmatprep.subr.mxu0 0.0
  %97 = vmatpush1.msra.mxu0 0.0
  %98 = vmatprep.subr.mxu0 0.0
  %99 = vmatpush1.msra.mxu0 0.0
  %100 = vmatprep.subr.mxu0 0.0
  %101 = vmatpush1.msra.mxu0 0.0
  %102 = vmatprep.subr.mxu0 0.0
  %103 = vmatpush1.msra.mxu0 0.0
  %104 = vmatprep.subr.mxu0 0.0
  %105 = vmatpush1.msra.mxu0 0.0
  %106 = vmatprep.subr.mxu0 0.0
  %107 = vmatpush1.msra.mxu0 0.0
  %108 = vmatprep.subr.mxu0 0.0
  %109 = vmatpush1.msra.mxu0 0.0
  %110 = vmatprep.subr.mxu0 0.0
  %111 = vmatpush1.msra.mxu0 0.0
  %112 = vmatprep.subr.mxu0 0.0
  %113 = vmatpush1.msra.mxu0 0.0
  %114 = vmatprep.subr.mxu0 0.0
  %115 = vmatpush1.msra.mxu0 0.0
  %116 = vmatprep.subr.mxu0 0.0
  %117 = vmatpush1.msra.mxu0 0.0
  %118 = vmatprep.subr.mxu0 0.0
  %119 = vmatpush1.msra.mxu0 0.0
  %120 = vmatprep.subr.mxu0 0.0
  %121 = vmatpush1.msra.mxu0 0.0
  %122 = vmatprep.subr.mxu0 0.0
  %123 = vmatpush1.msra.mxu0 0.0
  %124 = vmatprep.subr.mxu0 0.0
  %125 = vmatpush1.msra.mxu0 0.0
  %126 = vmatprep.subr.mxu0 0.0
  %127 = vmatpush1.msra.mxu0 0.0
  %128 = vmatprep.subr.mxu0 0.0
  %129 = vmatpush1.msra.mxu0 0.0
  %130 = vmatprep.subr.mxu0 0.0
  %131 = vmatpush1.msra.mxu0 0.0
  %132 = vmatprep.subr.mxu0 0.0
  %133 = vmatpush1.msra.mxu0 0.0
  %134 = vmatprep.subr.mxu0 0.0
  %135 = vmatpush1.msra.mxu0 0.0
  %136 = vmatprep.subr.mxu0 0.0
  %137 = vmatpush1.msra.mxu0 0.0
  %138 = vmatprep.mubr.f32.mxu0 0.0
  %139 = vmatmul.mubr.f32.gmra.mrb[0].mxu0 %v63
  %v140 = vpop.f32.mrb[0].mxu0
  %v141 = vadd.f32 %v44, %v140
  %v142 = vpop.f32.mrb[0].mxu0
  %143 = vmatprep.mubr.f32.mxu0 0.0
  %144 = vmatmul.mubr.f32.gmra.mrb[0].mxu0 %v66
  %v145 = vpop.f32.mrb[0].mxu0
  %v146 = vadd.f32 %v49, %v145
  %v147 = vpop.f32.mrb[0].mxu0
  %148 = vmatprep.mubr.f32.mxu0 0.0
  %149 = vmatmul.mubr.f32.gmra.mrb[0].mxu0 %v69
  %v150 = vpop.f32.mrb[0].mxu0
  %v151 = vadd.f32 %v54, %v150
  %v152 = vpop.f32.mrb[0].mxu0
  %153 = vmatprep.mubr.f32.mxu0 0.0
  %154 = vmatmul.mubr.f32.gmra.mrb[0].mxu0 %v72
  %v155 = vpop.f32.mrb[0].mxu0
  %v156 = vadd.f32 %v59, %v155
  %v157 = vpop.f32.mrb[0].mxu0
  %158 = vdwg.mxu0
  %v159 = vmax.f32 %v141, 0.0
  %v160 = vmax.f32 %v146, 0.0
  %v161 = vmax.f32 %v151, 0.0
  %v162 = vmax.f32 %v156, 0.0
  %v163 = vld [vmem:[%s3] sm:$0xff]
  %v164 = vld [vmem:[%s3 + $0x8] sm:$0xff]
  %v165 = vld [vmem:[%s3 + $0x10] sm:$0xff]
  %v166 = vld [vmem:[%s3 + $0x18] sm:$0xff]
  %v167 = vld [vmem:[%s4] sm:$0xff]
  %v168 = vld [vmem:[%s4 + $0x8] sm:$0xff]
  %v169 = vld [vmem:[%s4 + $0x10] sm:$0xff]
  %v170 = vld [vmem:[%s4 + $0x18] sm:$0xff]
  %vm171 = vcmask 64512
  %v173 = vsel %vm171, %v167, 0
  %v176 = vsel %vm171, %v168, 0
  %v179 = vsel %vm171, %v169, 0
  %v182 = vsel %vm171, %v170, 0
  %184 = vmatprep.subr.mxu0 0.0
  %185 = vmatpush1.msra.mxu0 %v32
  %186 = vmatprep.subr.mxu0 0.0
  %187 = vmatpush1.msra.mxu0 0.0
  %188 = vmatprep.subr.mxu0 0.0
  %189 = vmatpush1.msra.mxu0 0.0
  %190 = vmatprep.subr.mxu0 0.0
  %191 = vmatpush1.msra.mxu0 0.0
  %192 = vmatprep.subr.mxu0 0.0
  %193 = vmatpush1.msra.mxu0 0.0
  %194 = vmatprep.subr.mxu0 0.0
  %195 = vmatpush1.msra.mxu0 0.0
  %196 = vmatprep.subr.mxu0 0.0
  %197 = vmatpush1.msra.mxu0 0.0
  %198 = vmatprep.subr.mxu0 0.0
  %199 = vmatpush1.msra.mxu0 0.0
  %200 = vmatprep.subr.mxu0 0.0
  %201 = vmatpush1.msra.mxu0 0.0
  %202 = vmatprep.subr.mxu0 0.0
  %203 = vmatpush1.msra.mxu0 0.0
  %204 = vmatprep.subr.mxu0 0.0
  %205 = vmatpush1.msra.mxu0 0.0
  %206 = vmatprep.subr.mxu0 0.0
  %207 = vmatpush1.msra.mxu0 0.0
  %208 = vmatprep.subr.mxu0 0.0
  %209 = vmatpush1.msra.mxu0 0.0
  %210 = vmatprep.subr.mxu0 0.0
  %211 = vmatpush1.msra.mxu0 0.0
  %212 = vmatprep.subr.mxu0 0.0
  %213 = vmatpush1.msra.mxu0 0.0
  %214 = vmatprep.subr.mxu0 0.0
  %215 = vmatpush1.msra.mxu0 0.0
  %216 = vmatprep.subr.mxu0 0.0
  %217 = vmatpush1.msra.mxu0 0.0
  %218 = vmatprep.subr.mxu0 0.0
  %219 = vmatpush1.msra.mxu0 0.0
  %220 = vmatprep.subr.mxu0 0.0
  %221 = vmatpush1.msra.mxu0 0.0
  %222 = vmatprep.subr.mxu0 0.0
  %223 = vmatpush1.msra.mxu0 0.0
  %224 = vmatprep.subr.mxu0 0.0
  %225 = vmatpush1.msra.mxu0 0.0
  %226 = vmatprep.subr.mxu0 0.0
  %227 = vmatpush1.msra.mxu0 0.0
  %228 = vmatprep.subr.mxu0 0.0
  %229 = vmatpush1.msra.mxu0 0.0
  %230 = vmatprep.subr.mxu0 0.0
  %231 = vmatpush1.msra.mxu0 0.0
  %232 = vmatprep.subr.mxu0 0.0
  %233 = vmatpush1.msra.mxu0 0.0
  %234 = vmatprep.subr.mxu0 0.0
  %235 = vmatpush1.msra.mxu0 0.0
  %236 = vmatprep.subr.mxu0 0.0
  %237 = vmatpush1.msra.mxu0 0.0
  %238 = vmatprep.subr.mxu0 0.0
  %239 = vmatpush1.msra.mxu0 0.0
  %240 = vmatprep.subr.mxu0 0.0
  %241 = vmatpush1.msra.mxu0 0.0
  %242 = vmatprep.subr.mxu0 0.0
  %243 = vmatpush1.msra.mxu0 0.0
  %244 = vmatprep.subr.mxu0 0.0
  %245 = vmatpush1.msra.mxu0 0.0
  %246 = vmatprep.subr.mxu0 0.0
  %247 = vmatpush1.msra.mxu0 0.0
  %248 = vmatprep.mubr.f32.mxu0 0.0
  %249 = vmatmul.mubr.f32.gmra.mrb[0].mxu0 %v173
  %v250 = vpop.f32.mrb[0].mxu0
  %v251 = vadd.f32 0.0, %v250
  %v252 = vpop.f32.mrb[0].mxu0
  %253 = vmatprep.mubr.f32.mxu0 0.0
  %254 = vmatmul.mubr.f32.gmra.mrb[0].mxu0 %v176
  %v255 = vpop.f32.mrb[0].mxu0
  %v256 = vadd.f32 0.0, %v255
  %v257 = vpop.f32.mrb[0].mxu0
  %258 = vmatprep.mubr.f32.mxu0 0.0
  %259 = vmatmul.mubr.f32.gmra.mrb[0].mxu0 %v179
  %v260 = vpop.f32.mrb[0].mxu0
  %v261 = vadd.f32 0.0, %v260
  %v262 = vpop.f32.mrb[0].mxu0
  %263 = vmatprep.mubr.f32.mxu0 0.0
  %264 = vmatmul.mubr.f32.gmra.mrb[0].mxu0 %v182
  %v265 = vpop.f32.mrb[0].mxu0
  %v266 = vadd.f32 0.0, %v265
  %v267 = vpop.f32.mrb[0].mxu0
  %268 = vdwg.mxu0
  %vm269 = vcmask 261120
  %v271 = vsel %vm269, %v163, 0
  %v274 = vsel %vm269, %v164, 0
  %v277 = vsel %vm269, %v165, 0
  %v280 = vsel %vm269, %v166, 0
  %282 = vmatprep.subr.mxu0 0.0
  %283 = vmatpush1.msra.mxu0 %v159
  %284 = vmatprep.subr.mxu0 0.0
  %285 = vmatpush1.msra.mxu0 %v160
  %286 = vmatprep.subr.mxu0 0.0
  %287 = vmatpush1.msra.mxu0 %v161
  %288 = vmatprep.subr.mxu0 0.0
  %289 = vmatpush1.msra.mxu0 %v162
  %290 = vmatprep.subr.mxu0 0.0
  %291 = vmatpush1.msra.mxu0 0.0
  %292 = vmatprep.subr.mxu0 0.0
  %293 = vmatpush1.msra.mxu0 0.0
  %294 = vmatprep.subr.mxu0 0.0
  %295 = vmatpush1.msra.mxu0 0.0
  %296 = vmatprep.subr.mxu0 0.0
  %297 = vmatpush1.msra.mxu0 0.0
  %298 = vmatprep.subr.mxu0 0.0
  %299 = vmatpush1.msra.mxu0 0.0
  %300 = vmatprep.subr.mxu0 0.0
  %301 = vmatpush1.msra.mxu0 0.0
  %302 = vmatprep.subr.mxu0 0.0
  %303 = vmatpush1.msra.mxu0 0.0
  %304 = vmatprep.subr.mxu0 0.0
  %305 = vmatpush1.msra.mxu0 0.0
  %306 = vmatprep.subr.mxu0 0.0
  %307 = vmatpush1.msra.mxu0 0.0
  %308 = vmatprep.subr.mxu0 0.0
  %309 = vmatpush1.msra.mxu0 0.0
  %310 = vmatprep.subr.mxu0 0.0
  %311 = vmatpush1.msra.mxu0 0.0
  %312 = vmatprep.subr.mxu0 0.0
  %313 = vmatpush1.msra.mxu0 0.0
  %314 = vmatprep.subr.mxu0 0.0
  %315 = vmatpush1.msra.mxu0 0.0
  %316 = vmatprep.subr.mxu0 0.0
  %317 = vmatpush1.msra.mxu0 0.0
  %318 = vmatprep.subr.mxu0 0.0
  %319 = vmatpush1.msra.mxu0 0.0
  %320 = vmatprep.subr.mxu0 0.0
  %321 = vmatpush1.msra.mxu0 0.0
  %322 = vmatprep.subr.mxu0 0.0
  %323 = vmatpush1.msra.mxu0 0.0
  %324 = vmatprep.subr.mxu0 0.0
  %325 = vmatpush1.msra.mxu0 0.0
  %326 = vmatprep.subr.mxu0 0.0
  %327 = vmatpush1.msra.mxu0 0.0
  %328 = vmatprep.subr.mxu0 0.0
  %329 = vmatpush1.msra.mxu0 0.0
  %330 = vmatprep.subr.mxu0 0.0
  %331 = vmatpush1.msra.mxu0 0.0
  %332 = vmatprep.subr.mxu0 0.0
  %333 = vmatpush1.msra.mxu0 0.0
  %334 = vmatprep.subr.mxu0 0.0
  %335 = vmatpush1.msra.mxu0 0.0
  %336 = vmatprep.subr.mxu0 0.0
  %337 = vmatpush1.msra.mxu0 0.0
  %338 = vmatprep.subr.mxu0 0.0
  %339 = vmatpush1.msra.mxu0 0.0
  %340 = vmatprep.subr.mxu0 0.0
  %341 = vmatpush1.msra.mxu0 0.0
  %342 = vmatprep.subr.mxu0 0.0
  %343 = vmatpush1.msra.mxu0 0.0
  %344 = vmatprep.subr.mxu0 0.0
  %345 = vmatpush1.msra.mxu0 0.0
  %346 = vmatprep.mubr.f32.mxu0 0.0
  %347 = vmatmul.mubr.f32.gmra.mrb[0].mxu0 %v271
  %v348 = vpop.f32.mrb[0].mxu0
  %v349 = vadd.f32 %v251, %v348
  %v350 = vpop.f32.mrb[0].mxu0
  %351 = vmatprep.mubr.f32.mxu0 0.0
  %352 = vmatmul.mubr.f32.gmra.mrb[0].mxu0 %v274
  %v353 = vpop.f32.mrb[0].mxu0
  %v354 = vadd.f32 %v256, %v353
  %v355 = vpop.f32.mrb[0].mxu0
  %356 = vmatprep.mubr.f32.mxu0 0.0
  %357 = vmatmul.mubr.f32.gmra.mrb[0].mxu0 %v277
  %v358 = vpop.f32.mrb[0].mxu0
  %v359 = vadd.f32 %v261, %v358
  %v360 = vpop.f32.mrb[0].mxu0
  %361 = vmatprep.mubr.f32.mxu0 0.0
  %362 = vmatmul.mubr.f32.gmra.mrb[0].mxu0 %v280
  %v363 = vpop.f32.mrb[0].mxu0
  %v364 = vadd.f32 %v266, %v363
  %v365 = vpop.f32.mrb[0].mxu0
  %366 = vdwg.mxu0
  %v367 = vld [vmem:[%s5] sm:$0xff]
  %v368 = vld [vmem:[%s5 + $0x8] sm:$0xff]
  %v369 = vld [vmem:[%s5 + $0x10] sm:$0xff]
  %v370 = vld [vmem:[%s5 + $0x18] sm:$0xff]
  %372 = vset.pattern.permute.xlu0 0
  %373 = vperm.xlu0 %372, %v367
  %v374 = vpop.permute.xlu0 %373
  %377 = vset.pattern.permute.xlu0 0
  %378 = vperm.xlu0 %377, %v368
  %v379 = vpop.permute.xlu0 %378
  %382 = vset.pattern.permute.xlu0 0
  %383 = vperm.xlu0 %382, %v369
  %v384 = vpop.permute.xlu0 %383
  %387 = vset.pattern.permute.xlu0 0
  %388 = vperm.xlu0 %387, %v370
  %v389 = vpop.permute.xlu0 %388
  %v391 = vadd.f32 %v349, %v374
  %v392 = vadd.f32 %v354, %v379
  %v393 = vadd.f32 %v359, %v384
  %v394 = vadd.f32 %v364, %v389
  %v395 = vmax.f32 %v391, 0.0
  %v396 = vmax.f32 %v392, 0.0
  %v397 = vmax.f32 %v393, 0.0
  %v398 = vmax.f32 %v394, 0.0
  %v399 = vld [vmem:[%s6] sm:$0xff]
  %v400 = vld [vmem:[%s6 + $0x8] sm:$0xff]
  %v401 = vld [vmem:[%s6 + $0x10] sm:$0xff]
  %v402 = vld [vmem:[%s6 + $0x18] sm:$0xff]
  %404 = vset.pattern.permute.xlu0 0
  %405 = vperm.xlu0 %404, %v399
  %v406 = vpop.permute.xlu0 %405
  %409 = vset.pattern.permute.xlu0 0
  %410 = vperm.xlu0 %409, %v400
  %v411 = vpop.permute.xlu0 %410
  %414 = vset.pattern.permute.xlu0 0
  %415 = vperm.xlu0 %414, %v401
  %v416 = vpop.permute.xlu0 %415
  %419 = vset.pattern.permute.xlu0 0
  %420 = vperm.xlu0 %419, %v402
  %v421 = vpop.permute.xlu0 %420
  %v423 = vmul.f32 %v395, %v406
  %v424 = vmul.f32 %v396, %v411
  %v425 = vmul.f32 %v397, %v416
  %v426 = vmul.f32 %v398, %v421
  %v427 = vadd.f32 %v423, %v424
  %v428 = vadd.f32 %v427, %v425
  %v429 = vadd.f32 %v428, %v426
  %v430 = vrot.slane %v429, 4
  %v431 = vadd.f32 %v429, %v430
  %v432 = vrot.slane %v431, 2
  %v433 = vadd.f32 %v431, %v432
  %v434 = vrot.slane %v433, 1
  %v435 = vadd.f32 %v433, %v434
  %s436 = sld [smem:[#allocation2]]
  %v437 = vstv %s436
  %v438 = vadd.f32 %v435, %v437
  %439 = vst [vmem:[%s8] sm:$0x1] %v438
  // Predicated region
  $region34: #{critic_forward.1} parent=0 // pred_check
    _
  $region35: #{critic_forward.1} parent=0 // pred_check_branch
    %441 = sbr.rel (0) target = $region37
  $region36: #{critic_forward.1} parent=0 // pred_region
    _
  $region37: #{critic_forward.1} parent=0 // pred_fallthru
    _
  // Predicated region
  $region38: #{critic_forward.1} parent=0 // pred_check
    _
  $region39: #{critic_forward.1} parent=0 // pred_check_branch
    %443 = sbr.rel (0) target = $region41
  $region40: #{critic_forward.1} parent=0 // pred_region
    _
  $region41: #{critic_forward.1} parent=0 // pred_fallthru
    _

</llo_original>
